<compile_context>
chip_gen: v7x
topology: tpu7x:2x2x1
jax: 0.10.0
libtpu: 0.0.40
codegen_flags: <defaults>
</compile_context>

<pallas_src>
import functools
import math

import jax
import jax.numpy as jnp
from jax import lax
from jax.experimental import pallas as pl
from jax.experimental.pallas import tpu as pltpu

LANES = 128
SUBLANES = 8
TARGET_BLOCK_BYTES = 4 * 1024 * 1024   # ~4 MiB / input / pipeline buffer
VMEM_LIMIT_BYTES = 32 * 1024 * 1024    # covers 2 inputs x 2 buffers x 4 MiB


def _dice_packed_kernel(x_ref, y_ref, out_ref, *, total_rows: int,
                        block_rows: int):
    """Per-block partial, packed into one int32 per (sublane, lane):
         low 16 bits  = sum over block of (b1 + b2)
         high 16 bits = sum over block of (b1 & b2)
    """
    i = pl.program_id(0)
    b1 = x_ref[...] != 0
    b2 = y_ref[...] != 0

    def reduce_and_store(b1v, b2v):
        packed = (b1v.astype(jnp.int32) + b2v.astype(jnp.int32)
                  + (jnp.logical_and(b1v, b2v).astype(jnp.int32) << 16))
        # Fold the block into an (8,128) partial with pure in-vreg adds; the
        # expensive cross-lane reduce happens once, in the wrapper.
        out_ref[...] = jnp.sum(
            packed.reshape(block_rows // SUBLANES, SUBLANES, LANES), axis=0)

    if total_rows % block_rows != 0:
        # Only the last grid step sees a ragged (DMA-padded) block: keep the
        # row mask there and off the hot interior blocks.
        is_last = i == pl.num_programs(0) - 1

        @pl.when(is_last)
        def _():
            valid = total_rows - i * block_rows
            row_ids = lax.broadcasted_iota(jnp.int32, (block_rows, LANES), 0)
            mask = row_ids < valid
            reduce_and_store(jnp.logical_and(b1, mask),
                             jnp.logical_and(b2, mask))

        @pl.when(jnp.logical_not(is_last))
        def _():
            reduce_and_store(b1, b2)
    else:
        reduce_and_store(b1, b2)


def _jnp_counts(x, y):
    b1 = x != 0
    b2 = y != 0
    counts = jnp.sum(b1.astype(jnp.int32)) + jnp.sum(b2.astype(jnp.int32))
    inter = jnp.sum(jnp.logical_and(b1, b2).astype(jnp.int32))
    return counts, inter


def dice_loss(im1: jax.Array, im2: jax.Array) -> jax.Array:
    if im1.shape != im2.shape:
        raise ValueError(
            "Shape mismatch: im1 and im2 must have the same shape.")

    total = math.prod(im1.shape)
    if total == 0:
        # TODO(synk): reference returns undefined `empty_score` when im_sum==0.
        return jnp.float32(jnp.nan)

    x = jnp.reshape(im1, (-1,))
    y = jnp.reshape(im2, (-1,))

    itemsize = jnp.dtype(im1.dtype).itemsize
    packing = max(1, 4 // max(itemsize, 1))      # sublane packing of the dtype
    min_rows = SUBLANES * packing                # 8 / 16 / 32 for f32/bf16/i8
    max_rows = max(min_rows, TARGET_BLOCK_BYTES // (LANES * max(itemsize, 1)))

    rows_main = total // LANES
    rem = total - rows_main * LANES

    counts_sum = jnp.int32(0)
    inter_sum = jnp.int32(0)
    kernel_start = 0

    if rows_main >= min_rows:
        kernel_start = rows_main * LANES
        x_main = x if rem == 0 else x[:kernel_start]
        y_main = y if rem == 0 else y[:kernel_start]
        x2d = jnp.reshape(x_main, (rows_main, LANES))
        y2d = jnp.reshape(y_main, (rows_main, LANES))

        block_rows = min(max_rows, (rows_main // min_rows) * min_rows)
        num_blocks = (rows_main + block_rows - 1) // block_rows
        out_rows = num_blocks * SUBLANES

        kernel = functools.partial(
            _dice_packed_kernel, total_rows=rows_main, block_rows=block_rows)

        packed_part = pl.pallas_call(
            kernel,
            out_shape=jax.ShapeDtypeStruct((out_rows, LANES), jnp.int32),
            grid=(num_blocks,),
            in_specs=[
                pl.BlockSpec((block_rows, LANES), lambda i: (i, 0)),
                pl.BlockSpec((block_rows, LANES), lambda i: (i, 0)),
            ],
            out_specs=pl.BlockSpec((SUBLANES, LANES), lambda i: (i, 0)),
            compiler_params=pltpu.CompilerParams(
                # No cross-grid carry -> independent steps -> both TCs on v7x
                # can take a share of the grid.
                dimension_semantics=("parallel",),
                vmem_limit_bytes=VMEM_LIMIT_BYTES,
            ),
        )(x2d, y2d)

        # Split the packed fields, then do the tiny cross-lane reduce here.
        # TODO(synk): int32 totals overflow for > ~1.07e9 mostly-nonzero
        # elements; use a wider accumulator under jax x64 for such sizes.
        counts_sum = counts_sum + jnp.sum(packed_part & 0xFFFF)
        inter_sum = inter_sum + jnp.sum(packed_part >> 16)

    if kernel_start < total:
        # Lane-unaligned tail (< 128 elements) and/or tiny inputs: plain jnp,
        # avoiding any jnp.pad full copy of the inputs.
        c_t, i_t = _jnp_counts(x[kernel_start:], y[kernel_start:])
        counts_sum = counts_sum + c_t
        inter_sum = inter_sum + i_t

    im_sum = counts_sum.astype(jnp.float32)
    intersection = inter_sum.astype(jnp.float32)
    # TODO(synk): original returns undefined `empty_score` when im_sum == 0;
    # here the division simply yields NaN in that (degenerate) case.
    return jnp.float32(1.0) - jnp.float32(2.0) * intersection / im_sum


if __name__ == "__main__":
    key = jax.random.PRNGKey(0)
    k1, k2 = jax.random.split(key)

    def ref_dice(a, b):
        b1 = a != 0
        b2 = b != 0
        im_sum = (jnp.sum(b1) + jnp.sum(b2)).astype(jnp.float32)
        inter = jnp.sum(jnp.logical_and(b1, b2)).astype(jnp.float32)
        return jnp.float32(1.0) - jnp.float32(2.0) * inter / im_sum

    # Primary case (NCHW, matching the PyTorch convention), lane-aligned.
    shape = (2, 4, 16, 16)
    im1 = (jax.random.uniform(k1, shape) > 0.5).astype(jnp.float32)
    im2 = (jax.random.uniform(k2, shape) > 0.5).astype(jnp.float32)
    loss = jax.block_until_ready(dice_loss(im1, im2))
    ref = ref_dice(im1, im2)
    assert jnp.allclose(loss, ref, atol=1e-6), (loss, ref)

    # Unaligned case: exercises the ragged last block (pl.when mask) and the
    # jnp tail path.
    k3, k4 = jax.random.split(k2)
    shape2 = (3, 5, 33, 17)
    a = (jax.random.uniform(k3, shape2) > 0.5).astype(jnp.float32)
    b = (jax.random.uniform(k4, shape2) > 0.5).astype(jnp.float32)
    loss2 = jax.block_until_ready(dice_loss(a, b))
    ref2 = ref_dice(a, b)
    assert jnp.allclose(loss2, ref2, atol=1e-6), (loss2, ref2)

    print("KERNEL_OK")
</pallas_src>

<mosaic_0001>
module attributes {stable_mosaic.version = 11 : i64} {
  func.func @_dice_packed_kernel(%arg0: i32, %arg1: memref<16x128xf32, #tpu.memory_space<vmem>>, %arg2: memref<16x128xf32, #tpu.memory_space<vmem>>, %arg3: memref<8x128xi32, #tpu.memory_space<vmem>>) attributes {dimension_semantics = [#tpu.dimension_semantics<parallel>], iteration_bounds = array<i64: 1>, scalar_prefetch = 0 : i64, scratch_operands = 0 : i64, tpu.core_type = #tpu.core_type<tc>, window_params = [{transform_indices = @transform_0, window_bounds = array<i64: 16, 128>}, {transform_indices = @transform_1, window_bounds = array<i64: 16, 128>}, {transform_indices = @transform_2, window_bounds = array<i64: 8, 128>}]} {
    %c0 = arith.constant 0 : index
    %c0_0 = arith.constant 0 : index
    %0 = vector.load %arg1[%c0, %c0_0] : memref<16x128xf32, #tpu.memory_space<vmem>>, vector<16x128xf32>
    %cst = arith.constant 0.000000e+00 : f32
    %1 = vector.broadcast %cst : f32 to vector<16x128xf32>
    %2 = arith.cmpf one, %0, %1 : vector<16x128xf32>
    %c0_1 = arith.constant 0 : index
    %c0_2 = arith.constant 0 : index
    %3 = vector.load %arg2[%c0_1, %c0_2] : memref<16x128xf32, #tpu.memory_space<vmem>>, vector<16x128xf32>
    %cst_3 = arith.constant 0.000000e+00 : f32
    %4 = vector.broadcast %cst_3 : f32 to vector<16x128xf32>
    %5 = arith.cmpf one, %3, %4 : vector<16x128xf32>
    %6 = arith.extui %2 : vector<16x128xi1> to vector<16x128xi32>
    %7 = arith.extui %5 : vector<16x128xi1> to vector<16x128xi32>
    %8 = arith.addi %6, %7 : vector<16x128xi32>
    %9 = arith.andi %2, %5 : vector<16x128xi1>
    %10 = arith.extui %9 : vector<16x128xi1> to vector<16x128xi32>
    %c16_i32 = arith.constant 16 : i32
    %11 = vector.broadcast %c16_i32 : i32 to vector<16x128xi32>
    %12 = arith.shli %10, %11 : vector<16x128xi32>
    %13 = arith.addi %8, %12 : vector<16x128xi32>
    %14 = vector.shape_cast %13 : vector<16x128xi32> to vector<2x8x128xi32>
    %cst_4 = arith.constant dense<0> : vector<8x128xi32>
    %15 = vector.multi_reduction <add>, %14, %cst_4 [0] : vector<2x8x128xi32> to vector<8x128xi32>
    %c0_5 = arith.constant 0 : index
    %c0_6 = arith.constant 0 : index
    %16 = vector.load %arg3[%c0_5, %c0_6] : memref<8x128xi32, #tpu.memory_space<vmem>>, vector<8x128xi32>
    tpu.vector_store %arg3[%c0_5, %c0_6], %15 {strides = array<i32>} : memref<8x128xi32, #tpu.memory_space<vmem>>, vector<8x128xi32>,
    return
  }
  func.func @transform_0(%arg0: i32) -> (i32, i32) {
    %c0_i32 = arith.constant 0 : i32
    %c0_i32_0 = arith.constant 0 : i32
    return %arg0, %c0_i32 : i32, i32
  }
  func.func @transform_1(%arg0: i32) -> (i32, i32) {
    %c0_i32 = arith.constant 0 : i32
    %c0_i32_0 = arith.constant 0 : i32
    return %arg0, %c0_i32 : i32, i32
  }
  func.func @transform_2(%arg0: i32) -> (i32, i32) {
    %c0_i32 = arith.constant 0 : i32
    %c0_i32_0 = arith.constant 0 : i32
    return %arg0, %c0_i32 : i32, i32
  }
}

</mosaic_0001>

<llo_original>
// kernel: tpu_custom_call.1
$region0: #{tpu_custom_call.1}
  #allocation0 [shape = 'u32[]', space=smem, size = 0x4, offset = 0x4, fixed_abs, tag = 'smem constant byte address 0x4 - core index']
  #allocation1 [shape = 'u32[144,128]{1,0:T(1,128)}', space=vmem, size = 0x12000, scoped, tag = 'internal scratch']
  %s0 = inlined_call_operand.hbm [shape: f32[16,128], index: 0, kind: input, shape index: {}]
  %s1 = inlined_call_operand.hbm [shape: f32[16,128], index: 1, kind: input, shape index: {}]
  %s2 = inlined_call_operand.hbm [shape: s32[8,128], index: 2, kind: output, shape index: {}]
  %s3 = sld [smem:[#allocation0]]
  $region26: #{tpu_custom_call.1} parent=0
    _
  %s5 = ssub.s32 1, %s3
  %s6 = scalar_select 0, %s5, %s3
  $region1: #{tpu_custom_call.1} parent=0
    #allocation2 [shape = 'u8[8192]{0}', space=vmem, size = 0x2000, scoped, tag = 'input window, operand 0, single buffered']
    #allocation3 [shape = 's32[1]{0}', space=sflag, size = 0x4, scoped, tag = 'scoped memory for tpu_custom_call.1']
    #allocation4 [shape = 's32[1]{0}', space=sflag, size = 0x4, scoped, tag = 'scoped memory for tpu_custom_call.1']
    #allocation5 [shape = 'u8[8192]{0}', space=vmem, size = 0x2000, scoped, tag = 'input window, operand 1, single buffered']
    #allocation6 [shape = 's32[1]{0}', space=sflag, size = 0x4, scoped, tag = 'scoped memory for tpu_custom_call.1']
    #allocation7 [shape = 'u8[4096]{0}', space=vmem, size = 0x1000, scoped, tag = 'output window, operand 0, single buffered']
    %7 = vsyncpa [#allocation3], 0
    %8 = vsyncpa [#allocation6], 0
    %9 = vsyncpa [#allocation4], 0
    // Predicated region
    $region2: #{tpu_custom_call.1} parent=1 // pred_check
      _
    $region3: #{tpu_custom_call.1} parent=1 // pred_check_branch
      %11 = sbr.rel (0) target = $region5
    $region4: #{tpu_custom_call.1} parent=1 // pred_region
      %s13 = ssub.s32 256, 256
      %14 = vsyncadd [#allocation3], %s13
      %s15 = sshll.u32 [#allocation2], 4
      %s16 = int_to_ptr.vmem [resolvable:$true] %s15
      %21 = dma.hbm_to_vmem [thread:$0]  %s0, 256, %s16, [#allocation3], 128, 128, 8
    $region5: #{tpu_custom_call.1} parent=1 // pred_fallthru
      _
    // Predicated region
    $region6: #{tpu_custom_call.1} parent=1 // pred_check
      _
    $region7: #{tpu_custom_call.1} parent=1 // pred_check_branch
      %23 = sbr.rel (0) target = $region9
    $region8: #{tpu_custom_call.1} parent=1 // pred_region
      %s25 = ssub.s32 256, 256
      %26 = vsyncadd [#allocation6], %s25
      %s27 = sshll.u32 [#allocation5], 4
      %s28 = int_to_ptr.vmem [resolvable:$true] %s27
      %33 = dma.hbm_to_vmem [thread:$0]  %s1, 256, %s28, [#allocation6], 128, 128, 8
    $region9: #{tpu_custom_call.1} parent=1 // pred_fallthru
      _
    // Predicated region
    $region10: #{tpu_custom_call.1} parent=1 // pred_check
      _
    $region11: #{tpu_custom_call.1} parent=1 // pred_check_branch
      %35 = sbr.rel (0) target = $region13
    $region12: #{tpu_custom_call.1} parent=1 // pred_region
      %36 = dma.done [#allocation3], 256
    $region13: #{tpu_custom_call.1} parent=1 // pred_fallthru
      _
    // Predicated region
    $region14: #{tpu_custom_call.1} parent=1 // pred_check
      _
    $region15: #{tpu_custom_call.1} parent=1 // pred_check_branch
      %38 = sbr.rel (0) target = $region17
    $region16: #{tpu_custom_call.1} parent=1 // pred_region
      %39 = dma.done [#allocation6], 256
    $region17: #{tpu_custom_call.1} parent=1 // pred_fallthru
      _
    %v40 = vld [vmem:[#allocation2] sm:$0xff]
    %v41 = vld [vmem:[#allocation2 + $0x8] sm:$0xff]
    %vm42 = vcmp.ne.f32.partialorder %v40, 0.0
    %vm43 = vcmp.ne.f32.partialorder %v41, 0.0
    %v44 = vld [vmem:[#allocation5] sm:$0xff]
    %v45 = vld [vmem:[#allocation5 + $0x8] sm:$0xff]
    %vm46 = vcmp.ne.f32.partialorder %v44, 0.0
    %vm47 = vcmp.ne.f32.partialorder %v45, 0.0
    %v48 = vsel %vm42, 1, 0
    %v49 = vsel %vm43, 1, 0
    %v50 = vsel %vm46, 1, 0
    %v51 = vsel %vm47, 1, 0
    %v52 = vadd.s32 %v48, %v50
    %v53 = vadd.s32 %v49, %v51
    %vm54 = vmand %vm42, %vm46
    %vm55 = vmand %vm43, %vm47
    %v56 = vsel %vm54, 1, 0
    %v57 = vsel %vm55, 1, 0
    %v58 = vshll.u32 %v56, 16
    %v59 = vshll.u32 %v57, 16
    %v60 = vadd.s32 %v52, %v58
    %v61 = vadd.s32 %v53, %v59
    %v62 = vadd.s32 %v60, %v61
    %63 = vst [vmem:[#allocation7] sm:$0xff] %v62
    // Predicated region
    $region18: #{tpu_custom_call.1} parent=1 // pred_check
      _
    $region19: #{tpu_custom_call.1} parent=1 // pred_check_branch
      %65 = sbr.rel (0) target = $region21
    $region20: #{tpu_custom_call.1} parent=1 // pred_region
      %s67 = ssub.s32 128, 128
      %68 = vsyncadd [#allocation4], %s67
      %s70 = sshll.u32 [#allocation7], 4
      %s71 = int_to_ptr.vmem [resolvable:$true] %s70
      %73 = dma.vmem_to_hbm [thread:$0]  %s71, 128, %s2, [#allocation4]
    $region21: #{tpu_custom_call.1} parent=1 // pred_fallthru
      _
    // Predicated region
    $region22: #{tpu_custom_call.1} parent=1 // pred_check
      _
    $region23: #{tpu_custom_call.1} parent=1 // pred_check_branch
      %75 = sbr.rel (0) target = $region25
    $region24: #{tpu_custom_call.1} parent=1 // pred_region
      %76 = dma.done [#allocation4], 128
    $region25: #{tpu_custom_call.1} parent=1 // pred_fallthru
      _
    %77 = vsyncpa [#allocation3], 1
    %78 = vsyncpa [#allocation6], 1
    %79 = vsyncpa [#allocation4], 1

</llo_original>
